<compile_context>
chip_gen: v7x
topology: tpu7x:2x2x1
jax: 0.10.0
libtpu: 0.0.40
codegen_flags: <defaults>
</compile_context>

<pallas_src>
import jax
import jax.numpy as jnp
from jax.experimental import pallas as pl
from jax.experimental.pallas import tpu as pltpu


def _constant_input_kernel(const_ref, out_ref):
    # const_ref: (1, F) resident VMEM tile of the flattened learned constant
    # out_ref:   (TB, F) VMEM tile of the output batch block
    out_ref[...] = jnp.broadcast_to(const_ref[...], out_ref.shape)


def constant_input_forward(x, const):
    """Replicates `const` (1, C, H, W) across the batch dim of `x`.

    x     : (B, ...) -- only x.shape[0] is used (as in the PyTorch module)
    const : (1, C, H, W) learned constant parameter
    returns (B, C, H, W), dtype of `const`
    """
    batch = x.shape[0]
    _, c, h, w = const.shape
    f = c * h * w

    # Flatten so the last dim is lane-dense; block last dim = full extent, so
    # the (8, 128) tiling constraint is satisfied for any C*H*W.
    const_flat = const.reshape(1, f)

    # Size the batch tile TB against a conservative output-block budget:
    # 2 (double-buffer) * TB * F * dtype_bytes must fit scoped VMEM with
    # headroom on every generation (v7x scoped default is 32 MiB).
    dtype_bytes = jnp.dtype(const.dtype).itemsize
    row_bytes = f * dtype_bytes
    budget_bytes = 8 * 1024 * 1024  # per output buffer
    tb_max = max(8, (budget_bytes // max(row_bytes, 1)) // 8 * 8)
    if batch <= tb_max:
        tb = batch            # full-extent block -> single grid step
    else:
        tb = tb_max           # multiple of 8 -> satisfies sublane constraint

    grid = (pl.cdiv(batch, tb),)

    out_flat = pl.pallas_call(
        _constant_input_kernel,
        out_shape=jax.ShapeDtypeStruct((batch, f), const.dtype),
        grid_spec=pltpu.PrefetchScalarGridSpec(
            num_scalar_prefetch=0,
            grid=grid,
            # Constant index_map -> the constant is DMA'd once and stays
            # resident in VMEM for the whole launch.
            in_specs=[pl.BlockSpec((1, f), lambda b: (0, 0))],
            out_specs=pl.BlockSpec((tb, f), lambda b: (b, 0)),
        ),
        compiler_params=pltpu.CompilerParams(
            dimension_semantics=("parallel",),
            vmem_limit_bytes=64 * 1024 * 1024,
        ),
    )(const_flat)

    return out_flat.reshape(batch, c, h, w)


if __name__ == "__main__":
    key = jax.random.PRNGKey(0)
    k_const, k_x = jax.random.split(key)

    channel = 4
    size = 4
    batch = 2

    # Deterministic init of the module's parameter: torch.randn(1, C, size, size)
    const = jax.random.normal(k_const, (1, channel, size, size), dtype=jnp.float32)

    # The forward's `input` tensor only contributes its batch dimension.
    x = jax.random.normal(k_x, (batch, 8), dtype=jnp.float32)

    out = constant_input_forward(x, const)
    out = jax.block_until_ready(out)

    # Reference check: out[b] == const[0] for every b.
    ref = jnp.broadcast_to(const, (batch, channel, size, size))
    assert out.shape == (batch, channel, size, size)
    assert out.dtype == jnp.float32
    assert jnp.array_equal(out, ref)

    print("KERNEL_OK")
</pallas_src>

<mosaic_0001>
module attributes {stable_mosaic.version = 11 : i64} {
  func.func @_constant_input_kernel(%arg0: i32, %arg1: memref<1x64xf32, #tpu.memory_space<vmem>>, %arg2: memref<2x64xf32, #tpu.memory_space<vmem>>) attributes {dimension_semantics = [#tpu.dimension_semantics<parallel>], iteration_bounds = array<i64: 1>, scalar_prefetch = 0 : i64, scratch_operands = 0 : i64, tpu.core_type = #tpu.core_type<tc>, window_params = [{pipeline_mode = #tpu.pipeline_mode<synchronous>, transform_indices = @transform_0, window_bounds = array<i64: 1, 64>}, {transform_indices = @transform_1, window_bounds = array<i64: 2, 64>}]} {
    %c0 = arith.constant 0 : index
    %c0_0 = arith.constant 0 : index
    %0 = vector.load %arg1[%c0, %c0_0] : memref<1x64xf32, #tpu.memory_space<vmem>>, vector<1x64xf32>
    %1 = vector.shape_cast %0 : vector<1x64xf32> to vector<1x64xf32>
    %2 = vector.broadcast %1 : vector<1x64xf32> to vector<2x64xf32>
    %c0_1 = arith.constant 0 : index
    %c0_2 = arith.constant 0 : index
    %3 = vector.load %arg2[%c0_1, %c0_2] : memref<2x64xf32, #tpu.memory_space<vmem>>, vector<2x64xf32>
    tpu.vector_store %arg2[%c0_1, %c0_2], %2 {strides = array<i32>} : memref<2x64xf32, #tpu.memory_space<vmem>>, vector<2x64xf32>,
    return
  }
  func.func @transform_0(%arg0: i32) -> (i32, i32) {
    %c0_i32 = arith.constant 0 : i32
    %c0_i32_0 = arith.constant 0 : i32
    %c0_i32_1 = arith.constant 0 : i32
    return %c0_i32, %c0_i32_0 : i32, i32
  }
  func.func @transform_1(%arg0: i32) -> (i32, i32) {
    %c0_i32 = arith.constant 0 : i32
    %c0_i32_0 = arith.constant 0 : i32
    return %arg0, %c0_i32 : i32, i32
  }
}

</mosaic_0001>

<llo_original>
// kernel: tpu_custom_call.1
$region0: #{tpu_custom_call.1}
  #allocation0 [shape = 'u32[]', space=smem, size = 0x4, offset = 0x4, fixed_abs, tag = 'smem constant byte address 0x4 - core index']
  #allocation1 [shape = 'u32[144,128]{1,0:T(1,128)}', space=vmem, size = 0x12000, scoped, tag = 'internal scratch']
  %s0 = inlined_call_operand.hbm [shape: f32[1,64], index: 0, kind: input, shape index: {}]
  %s1 = inlined_call_operand.hbm [shape: f32[2,64], index: 1, kind: output, shape index: {}]
  %s2 = sld [smem:[#allocation0]]
  $region18: #{tpu_custom_call.1} parent=0
    _
  %s4 = ssub.s32 1, %s2
  %s5 = scalar_select 0, %s4, %s2
  $region1: #{tpu_custom_call.1} parent=0
    #allocation2 [shape = 'u8[512]{0}', space=vmem, size = 0x400, scoped, tag = 'input window, operand 0, single buffered']
    #allocation3 [shape = 's32[1]{0}', space=sflag, size = 0x4, scoped, tag = 'scoped memory for tpu_custom_call.1']
    #allocation4 [shape = 's32[1]{0}', space=sflag, size = 0x4, scoped, tag = 'scoped memory for tpu_custom_call.1']
    #allocation5 [shape = 'u8[1024]{0}', space=vmem, size = 0x400, scoped, tag = 'output window, operand 0, single buffered']
    %6 = vsyncpa [#allocation3], 0
    %7 = vsyncpa [#allocation4], 0
    // Predicated region
    $region2: #{tpu_custom_call.1} parent=1 // pred_check
      _
    $region3: #{tpu_custom_call.1} parent=1 // pred_check_branch
      %9 = sbr.rel (0) target = $region5
    $region4: #{tpu_custom_call.1} parent=1 // pred_region
      %s11 = ssub.s32 16, 16
      %12 = vsyncadd [#allocation3], %s11
      %s14 = sshll.u32 [#allocation2], 4
      %s15 = int_to_ptr.vmem [resolvable:$true] %s14
      %17 = dma.hbm_to_vmem [thread:$0]  %s0, 16, %s15, [#allocation3]
    $region5: #{tpu_custom_call.1} parent=1 // pred_fallthru
      _
    // Predicated region
    $region6: #{tpu_custom_call.1} parent=1 // pred_check
      _
    $region7: #{tpu_custom_call.1} parent=1 // pred_check_branch
      %19 = sbr.rel (0) target = $region9
    $region8: #{tpu_custom_call.1} parent=1 // pred_region
      %20 = dma.done [#allocation3], 16
    $region9: #{tpu_custom_call.1} parent=1 // pred_fallthru
      _
    %v21 = vld [vmem:[#allocation2] sm:$0x1]
    %v23 = vlaneseq
    %v24 = vshrl.u32 %v23, 7
    %v25 = vsub.s32 0, %v24
    %v26 = vrot.slane %v21, %v25
    %vm28 = vcmask 517120
    %29 = vst.msk [vmem:[#allocation5] sm:$0x3] %vm28, %v26
    // Predicated region
    $region10: #{tpu_custom_call.1} parent=1 // pred_check
      _
    $region11: #{tpu_custom_call.1} parent=1 // pred_check_branch
      %31 = sbr.rel (0) target = $region13
    $region12: #{tpu_custom_call.1} parent=1 // pred_region
      %s33 = ssub.s32 32, 32
      %34 = vsyncadd [#allocation4], %s33
      %s36 = sshll.u32 [#allocation5], 4
      %s37 = int_to_ptr.vmem [resolvable:$true] %s36
      %39 = dma.vmem_to_hbm [thread:$0]  %s37, 32, %s1, [#allocation4]
    $region13: #{tpu_custom_call.1} parent=1 // pred_fallthru
      _
    // Predicated region
    $region14: #{tpu_custom_call.1} parent=1 // pred_check
      _
    $region15: #{tpu_custom_call.1} parent=1 // pred_check_branch
      %41 = sbr.rel (0) target = $region17
    $region16: #{tpu_custom_call.1} parent=1 // pred_region
      %42 = dma.done [#allocation4], 32
    $region17: #{tpu_custom_call.1} parent=1 // pred_fallthru
      _
    %43 = vsyncpa [#allocation3], 1
    %44 = vsyncpa [#allocation4], 1

</llo_original>
